<compile_context>
chip_gen: v5e
topology: v5e:2x2
jax: 0.10.0
libtpu: 0.0.40
codegen_flags: <defaults>
</compile_context>

<pallas_src>
import jax
import jax.numpy as jnp
from jax.experimental import pallas as pl
from jax.experimental.pallas import tpu as pltpu


def _dwt_kernel(x1_ref, x2_ref, x3_ref, x4_ref, out_ref):
    # Blocks: x*_ref (1, cb, th, W2); out_ref (1, 4, cb, th, W2).
    x1 = x1_ref[0].astype(jnp.float32)  # even rows, even cols
    x2 = x2_ref[0].astype(jnp.float32)  # odd  rows, even cols
    x3 = x3_ref[0].astype(jnp.float32)  # even rows, odd  cols
    x4 = x4_ref[0].astype(jnp.float32)  # odd  rows, odd  cols
    # Lifting-form Haar butterfly: 12 VALU ops instead of 16.
    s1 = (x1 + x2) * 0.5
    s2 = (x3 + x4) * 0.5
    d1 = (x2 - x1) * 0.5
    d2 = (x4 - x3) * 0.5
    dt = out_ref.dtype
    out_ref[0, 0] = (s1 + s2).astype(dt)   # LL
    out_ref[0, 1] = (s2 - s1).astype(dt)   # HL
    out_ref[0, 2] = (d1 + d2).astype(dt)   # LH
    out_ref[0, 3] = (d2 - d1).astype(dt)   # HH


def _pick_tiles(C, H2, W2):
    """Pick (channels, rows) per block targeting ~0.5 MiB f32 per input block."""
    budget = 128 * 1024  # elements per input-plane block (~512 KiB f32)
    if H2 * W2 <= budget or H2 % 8 != 0:
        th = H2                                   # full rows: always legal
    else:
        th = min(H2, max(8, (budget // max(W2, 1)) // 8 * 8))  # multiple of 8
    cb = max(1, min(C, budget // max(1, th * W2)))
    return cb, th


@jax.jit
def dwt_forward(x):
    B, C, H, W = x.shape
    assert H % 2 == 0 and W % 2 == 0, "DWT requires even spatial dims"
    H2, W2 = H // 2, W // 2

    # glue: even/odd parity planes (XLA strided slices), each (B, C, H2, W2)
    x1 = x[:, :, 0::2, 0::2]
    x2 = x[:, :, 1::2, 0::2]
    x3 = x[:, :, 0::2, 1::2]
    x4 = x[:, :, 1::2, 1::2]

    cb, th = _pick_tiles(C, H2, W2)
    grid = (B, pl.cdiv(C, cb), pl.cdiv(H2, th))

    in_spec = pl.BlockSpec((1, cb, th, W2), lambda b, c, r: (b, c, r, 0))
    out_spec = pl.BlockSpec((1, 4, cb, th, W2), lambda b, c, r: (b, 0, c, r, 0))

    out = pl.pallas_call(
        _dwt_kernel,
        out_shape=jax.ShapeDtypeStruct((B, 4, C, H2, W2), x.dtype),
        grid_spec=pltpu.PrefetchScalarGridSpec(
            num_scalar_prefetch=0,
            grid=grid,
            in_specs=[in_spec, in_spec, in_spec, in_spec],
            out_specs=out_spec,
        ),
        compiler_params=pltpu.CompilerParams(
            dimension_semantics=("parallel", "parallel", "parallel")),
    )(x1, x2, x3, x4)

    # Free reshape: (B, 4, C, H2, W2) -> (B, 4*C, H2, W2); channel order is
    # [LL_c0..c(C-1), HL_..., LH_..., HH_...] == torch.cat((LL,HL,LH,HH), 1).
    return out.reshape(B, 4 * C, H2, W2)


def dwt_ref(x):
    # pure-JAX reference mirroring dwt_init exactly
    x01 = x[:, :, 0::2, :] / 2
    x02 = x[:, :, 1::2, :] / 2
    x1 = x01[:, :, :, 0::2]
    x2 = x02[:, :, :, 0::2]
    x3 = x01[:, :, :, 1::2]
    x4 = x02[:, :, :, 1::2]
    x_LL = x1 + x2 + x3 + x4
    x_HL = -x1 - x2 + x3 + x4
    x_LH = -x1 + x2 - x3 + x4
    x_HH = x1 - x2 - x3 + x4
    return jnp.concatenate((x_LL, x_HL, x_LH, x_HH), axis=1)


if __name__ == "__main__":
    key = jax.random.PRNGKey(0)
    x = jax.random.normal(key, (2, 4, 16, 16), dtype=jnp.float32)

    out = dwt_forward(x)
    out = jax.block_until_ready(out)

    ref = dwt_ref(x)
    assert out.shape == (2, 16, 8, 8), out.shape
    assert jnp.allclose(out, ref, atol=1e-6, rtol=1e-6)

    print("KERNEL_OK")
</pallas_src>

<mosaic_0001>
module attributes {stable_mosaic.version = 11 : i64} {
  func.func @_dwt_kernel(%arg0: i32, %arg1: i32, %arg2: i32, %arg3: memref<1x4x8x8xf32, #tpu.memory_space<vmem>>, %arg4: memref<1x4x8x8xf32, #tpu.memory_space<vmem>>, %arg5: memref<1x4x8x8xf32, #tpu.memory_space<vmem>>, %arg6: memref<1x4x8x8xf32, #tpu.memory_space<vmem>>, %arg7: memref<1x4x4x8x8xf32, #tpu.memory_space<vmem>>) attributes {dimension_semantics = [#tpu.dimension_semantics<parallel>, #tpu.dimension_semantics<parallel>, #tpu.dimension_semantics<parallel>], iteration_bounds = array<i64: 2, 1, 1>, scalar_prefetch = 0 : i64, scratch_operands = 0 : i64, tpu.core_type = #tpu.core_type<tc>, window_params = [{transform_indices = @transform_0, window_bounds = array<i64: 1, 4, 8, 8>}, {transform_indices = @transform_1, window_bounds = array<i64: 1, 4, 8, 8>}, {transform_indices = @transform_2, window_bounds = array<i64: 1, 4, 8, 8>}, {transform_indices = @transform_3, window_bounds = array<i64: 1, 4, 8, 8>}, {transform_indices = @transform_4, window_bounds = array<i64: 1, 4, 4, 8, 8>}]} {
    %c0 = arith.constant 0 : index
    %c0_0 = arith.constant 0 : index
    %c0_1 = arith.constant 0 : index
    %c0_2 = arith.constant 0 : index
    %0 = vector.load %arg3[%c0, %c0_0, %c0_1, %c0_2] : memref<1x4x8x8xf32, #tpu.memory_space<vmem>>, vector<1x4x8x8xf32>
    %1 = vector.shape_cast %0 : vector<1x4x8x8xf32> to vector<4x8x8xf32>
    %c0_3 = arith.constant 0 : index
    %c0_4 = arith.constant 0 : index
    %c0_5 = arith.constant 0 : index
    %c0_6 = arith.constant 0 : index
    %2 = vector.load %arg4[%c0_3, %c0_4, %c0_5, %c0_6] : memref<1x4x8x8xf32, #tpu.memory_space<vmem>>, vector<1x4x8x8xf32>
    %3 = vector.shape_cast %2 : vector<1x4x8x8xf32> to vector<4x8x8xf32>
    %c0_7 = arith.constant 0 : index
    %c0_8 = arith.constant 0 : index
    %c0_9 = arith.constant 0 : index
    %c0_10 = arith.constant 0 : index
    %4 = vector.load %arg5[%c0_7, %c0_8, %c0_9, %c0_10] : memref<1x4x8x8xf32, #tpu.memory_space<vmem>>, vector<1x4x8x8xf32>
    %5 = vector.shape_cast %4 : vector<1x4x8x8xf32> to vector<4x8x8xf32>
    %c0_11 = arith.constant 0 : index
    %c0_12 = arith.constant 0 : index
    %c0_13 = arith.constant 0 : index
    %c0_14 = arith.constant 0 : index
    %6 = vector.load %arg6[%c0_11, %c0_12, %c0_13, %c0_14] : memref<1x4x8x8xf32, #tpu.memory_space<vmem>>, vector<1x4x8x8xf32>
    %7 = vector.shape_cast %6 : vector<1x4x8x8xf32> to vector<4x8x8xf32>
    %8 = arith.addf %1, %3 : vector<4x8x8xf32>
    %cst = arith.constant 5.000000e-01 : f32
    %9 = vector.broadcast %cst : f32 to vector<4x8x8xf32>
    %10 = arith.mulf %8, %9 : vector<4x8x8xf32>
    %11 = arith.addf %5, %7 : vector<4x8x8xf32>
    %cst_15 = arith.constant 5.000000e-01 : f32
    %12 = vector.broadcast %cst_15 : f32 to vector<4x8x8xf32>
    %13 = arith.mulf %11, %12 : vector<4x8x8xf32>
    %14 = arith.subf %3, %1 : vector<4x8x8xf32>
    %cst_16 = arith.constant 5.000000e-01 : f32
    %15 = vector.broadcast %cst_16 : f32 to vector<4x8x8xf32>
    %16 = arith.mulf %14, %15 : vector<4x8x8xf32>
    %17 = arith.subf %7, %5 : vector<4x8x8xf32>
    %cst_17 = arith.constant 5.000000e-01 : f32
    %18 = vector.broadcast %cst_17 : f32 to vector<4x8x8xf32>
    %19 = arith.mulf %17, %18 : vector<4x8x8xf32>
    %20 = arith.addf %10, %13 : vector<4x8x8xf32>
    %c0_18 = arith.constant 0 : index
    %c0_19 = arith.constant 0 : index
    %c0_20 = arith.constant 0 : index
    %c0_21 = arith.constant 0 : index
    %c0_22 = arith.constant 0 : index
    %21 = vector.load %arg7[%c0_18, %c0_19, %c0_20, %c0_21, %c0_22] : memref<1x4x4x8x8xf32, #tpu.memory_space<vmem>>, vector<1x1x4x8x8xf32>
    %22 = vector.shape_cast %21 : vector<1x1x4x8x8xf32> to vector<4x8x8xf32>
    %23 = vector.shape_cast %20 : vector<4x8x8xf32> to vector<1x1x4x8x8xf32>
    tpu.vector_store %arg7[%c0_18, %c0_19, %c0_20, %c0_21, %c0_22], %23 {strides = array<i32>} : memref<1x4x4x8x8xf32, #tpu.memory_space<vmem>>, vector<1x1x4x8x8xf32>,
    %24 = arith.subf %13, %10 : vector<4x8x8xf32>
    %c0_23 = arith.constant 0 : index
    %c1 = arith.constant 1 : index
    %c0_24 = arith.constant 0 : index
    %c0_25 = arith.constant 0 : index
    %c0_26 = arith.constant 0 : index
    %25 = vector.load %arg7[%c0_23, %c1, %c0_24, %c0_25, %c0_26] : memref<1x4x4x8x8xf32, #tpu.memory_space<vmem>>, vector<1x1x4x8x8xf32>
    %26 = vector.shape_cast %25 : vector<1x1x4x8x8xf32> to vector<4x8x8xf32>
    %27 = vector.shape_cast %24 : vector<4x8x8xf32> to vector<1x1x4x8x8xf32>
    tpu.vector_store %arg7[%c0_23, %c1, %c0_24, %c0_25, %c0_26], %27 {strides = array<i32>} : memref<1x4x4x8x8xf32, #tpu.memory_space<vmem>>, vector<1x1x4x8x8xf32>,
    %28 = arith.addf %16, %19 : vector<4x8x8xf32>
    %c0_27 = arith.constant 0 : index
    %c2 = arith.constant 2 : index
    %c0_28 = arith.constant 0 : index
    %c0_29 = arith.constant 0 : index
    %c0_30 = arith.constant 0 : index
    %29 = vector.load %arg7[%c0_27, %c2, %c0_28, %c0_29, %c0_30] : memref<1x4x4x8x8xf32, #tpu.memory_space<vmem>>, vector<1x1x4x8x8xf32>
    %30 = vector.shape_cast %29 : vector<1x1x4x8x8xf32> to vector<4x8x8xf32>
    %31 = vector.shape_cast %28 : vector<4x8x8xf32> to vector<1x1x4x8x8xf32>
    tpu.vector_store %arg7[%c0_27, %c2, %c0_28, %c0_29, %c0_30], %31 {strides = array<i32>} : memref<1x4x4x8x8xf32, #tpu.memory_space<vmem>>, vector<1x1x4x8x8xf32>,
    %32 = arith.subf %19, %16 : vector<4x8x8xf32>
    %c0_31 = arith.constant 0 : index
    %c3 = arith.constant 3 : index
    %c0_32 = arith.constant 0 : index
    %c0_33 = arith.constant 0 : index
    %c0_34 = arith.constant 0 : index
    %33 = vector.load %arg7[%c0_31, %c3, %c0_32, %c0_33, %c0_34] : memref<1x4x4x8x8xf32, #tpu.memory_space<vmem>>, vector<1x1x4x8x8xf32>
    %34 = vector.shape_cast %33 : vector<1x1x4x8x8xf32> to vector<4x8x8xf32>
    %35 = vector.shape_cast %32 : vector<4x8x8xf32> to vector<1x1x4x8x8xf32>
    tpu.vector_store %arg7[%c0_31, %c3, %c0_32, %c0_33, %c0_34], %35 {strides = array<i32>} : memref<1x4x4x8x8xf32, #tpu.memory_space<vmem>>, vector<1x1x4x8x8xf32>,
    return
  }
  func.func @transform_0(%arg0: i32, %arg1: i32, %arg2: i32) -> (i32, i32, i32, i32) {
    %c0_i32 = arith.constant 0 : i32
    %c0_i32_0 = arith.constant 0 : i32
    return %arg0, %arg1, %arg2, %c0_i32 : i32, i32, i32, i32
  }
  func.func @transform_1(%arg0: i32, %arg1: i32, %arg2: i32) -> (i32, i32, i32, i32) {
    %c0_i32 = arith.constant 0 : i32
    %c0_i32_0 = arith.constant 0 : i32
    return %arg0, %arg1, %arg2, %c0_i32 : i32, i32, i32, i32
  }
  func.func @transform_2(%arg0: i32, %arg1: i32, %arg2: i32) -> (i32, i32, i32, i32) {
    %c0_i32 = arith.constant 0 : i32
    %c0_i32_0 = arith.constant 0 : i32
    return %arg0, %arg1, %arg2, %c0_i32 : i32, i32, i32, i32
  }
  func.func @transform_3(%arg0: i32, %arg1: i32, %arg2: i32) -> (i32, i32, i32, i32) {
    %c0_i32 = arith.constant 0 : i32
    %c0_i32_0 = arith.constant 0 : i32
    return %arg0, %arg1, %arg2, %c0_i32 : i32, i32, i32, i32
  }
  func.func @transform_4(%arg0: i32, %arg1: i32, %arg2: i32) -> (i32, i32, i32, i32, i32) {
    %c0_i32 = arith.constant 0 : i32
    %c0_i32_0 = arith.constant 0 : i32
    %c0_i32_1 = arith.constant 0 : i32
    return %arg0, %c0_i32, %arg1, %arg2, %c0_i32_0 : i32, i32, i32, i32, i32
  }
}

</mosaic_0001>

<llo_original>
// kernel: dwt_forward.1
$region0: #{dwt_forward.1}
  #allocation0 [shape = 'u32[]', space=smem, size = 0x4, offset = 0x4, fixed_abs, tag = 'smem constant byte address 0x4 - core index']
  #allocation1 [shape = 'u32[72,128]{1,0:T(1,128)}', space=vmem, size = 0x9000, scoped, tag = 'internal scratch']
  %s0 = inlined_call_operand.vmem [shape: f32[2,4,8,8], index: 0, kind: input, shape index: {}]
  %s1 = inlined_call_operand.vmem [shape: f32[2,4,8,8], index: 1, kind: input, shape index: {}]
  %s2 = inlined_call_operand.vmem [shape: f32[2,4,8,8], index: 2, kind: input, shape index: {}]
  %s3 = inlined_call_operand.vmem [shape: f32[2,4,8,8], index: 3, kind: input, shape index: {}]
  %s4 = inlined_call_operand.vmem [shape: f32[2,4,4,8,8], index: 4, kind: output, shape index: {}]
  %s5 = sld [smem:[#allocation0]]
  $region49: #{dwt_forward.1} parent=0
    _
  %s7 = ssub.s32 1, %s5
  %s8 = scalar_select 0, %s7, %s5
  loop: start=0, step=1, limit=4
  $region2: #{dwt_forward.1} parent=0 // loop_pre_header
    _
  $region3: #{dwt_forward.1} parent=0 // loop_header
    %s10 = sphi 0, %s14
    %p11 = scmp.ge.s32.totalorder %s10, 4
    %s17 = sphi 0, %s36
    %s18 = sphi 0, %s32
    %s19 = sphi 0, %s28
    %s20 = sphi 0, %s17
    %s21 = sphi 0, %s18
    %s22 = sphi 0, %s19
    %s23 = sphi 0, %s20
    %s24 = sphi 0, %s21
    %s25 = sphi 0, %s22
    %s43 = sphi 0, %s45
    %s46 = sphi 0, %s43
    %s47 = sphi 0, %s46
    %s63 = sphi 0, %s47
    %s73 = sphi 0, %s75
    %s76 = sphi 0, %s73
    %s77 = sphi 0, %s76
    %s93 = sphi 0, %s77
    %s103 = sphi 0, %s105
    %s106 = sphi 0, %s103
    %s107 = sphi 0, %s106
    %s123 = sphi 0, %s107
    %s133 = sphi 0, %s135
    %s136 = sphi 0, %s133
    %s137 = sphi 0, %s136
    %s153 = sphi 0, %s137
    %s163 = sphi 0, %s165
    %s166 = sphi 0, %s163
    %s167 = sphi 0, %s166
    %s183 = sphi 0, %s167
  $region4: #{dwt_forward.1} parent=0 // loop_header_branch
    %13 = sbr.rel (%p11) target = $region8
  $region5: #{dwt_forward.1} parent=0 // loop_body
    %s15 = ssub.s32 %s10, 1
    %s16 = ssub.s32 %s10, 2
    %s26 = sadd.s32 1, %s19
    %p27 = scmp.ge.s32.totalorder %s26, 1
    %s28 = scalar_select %p27, 0, %s26
    %s29 = sadd.s32 1, %s18
    %s30 = scalar_select %p27, %s29, %s18
    %p31 = scmp.ge.s32.totalorder %s30, 1
    %s32 = scalar_select %p31, 0, %s30
    %s33 = sadd.s32 1, %s17
    %s34 = scalar_select %p31, %s33, %s17
    %p35 = scmp.ge.s32.totalorder %s34, 2
    %s36 = scalar_select %p35, 0, %s34
    %s37 = ssub.s32 %s17, %s36
    %s38 = ssub.s32 %s18, %s32
    %s39 = sor.u32 %s37, %s38
    %s40 = ssub.s32 %s19, %s28
    %s41 = sor.u32 %s39, %s40
    %p42 = scmp.eq.s32.totalorder %s41, 0
    %s44 = sadd.s32 %s43, 1
    %s45 = scalar_select %p42, %s43, %s44
    %p48 = pneg %p42
    %p49 = scmp.eq.s32.totalorder %s10, 1
    %p50 = por %p48, %p49
    %p51 = scmp.ne.s32.totalorder %s43, %s46
    %p52 = scmp.eq.s32.totalorder %s10, 0
    %p53 = por %p51, %p52
    %p54 = scmp.ne.s32.totalorder %s43, %s46
    %p55 = scmp.eq.s32.totalorder %s15, 1
    %p56 = por %p54, %p55
    %p57 = scmp.ne.s32.totalorder %s46, %s47
    %p58 = scmp.eq.s32.totalorder %s15, 0
    %p59 = por %p57, %p58
    %p60 = scmp.ne.s32.totalorder %s46, %s47
    %p61 = scmp.eq.s32.totalorder %s16, 1
    %p62 = por %p60, %p61
    %p64 = scmp.ne.s32.totalorder %s47, %s63
    %p65 = scmp.eq.s32.totalorder %s16, 0
    %p66 = por %p64, %p65
    %s67 = ssub.s32 %s17, %s36
    %s68 = ssub.s32 %s18, %s32
    %s69 = sor.u32 %s67, %s68
    %s70 = ssub.s32 %s19, %s28
    %s71 = sor.u32 %s69, %s70
    %p72 = scmp.eq.s32.totalorder %s71, 0
    %s74 = sadd.s32 %s73, 1
    %s75 = scalar_select %p72, %s73, %s74
    %p78 = pneg %p72
    %p79 = scmp.eq.s32.totalorder %s10, 1
    %p80 = por %p78, %p79
    %p81 = scmp.ne.s32.totalorder %s73, %s76
    %p82 = scmp.eq.s32.totalorder %s10, 0
    %p83 = por %p81, %p82
    %p84 = scmp.ne.s32.totalorder %s73, %s76
    %p85 = scmp.eq.s32.totalorder %s15, 1
    %p86 = por %p84, %p85
    %p87 = scmp.ne.s32.totalorder %s76, %s77
    %p88 = scmp.eq.s32.totalorder %s15, 0
    %p89 = por %p87, %p88
    %p90 = scmp.ne.s32.totalorder %s76, %s77
    %p91 = scmp.eq.s32.totalorder %s16, 1
    %p92 = por %p90, %p91
    %p94 = scmp.ne.s32.totalorder %s77, %s93
    %p95 = scmp.eq.s32.totalorder %s16, 0
    %p96 = por %p94, %p95
    %s97 = ssub.s32 %s17, %s36
    %s98 = ssub.s32 %s18, %s32
    %s99 = sor.u32 %s97, %s98
    %s100 = ssub.s32 %s19, %s28
    %s101 = sor.u32 %s99, %s100
    %p102 = scmp.eq.s32.totalorder %s101, 0
    %s104 = sadd.s32 %s103, 1
    %s105 = scalar_select %p102, %s103, %s104
    %p108 = pneg %p102
    %p109 = scmp.eq.s32.totalorder %s10, 1
    %p110 = por %p108, %p109
    %p111 = scmp.ne.s32.totalorder %s103, %s106
    %p112 = scmp.eq.s32.totalorder %s10, 0
    %p113 = por %p111, %p112
    %p114 = scmp.ne.s32.totalorder %s103, %s106
    %p115 = scmp.eq.s32.totalorder %s15, 1
    %p116 = por %p114, %p115
    %p117 = scmp.ne.s32.totalorder %s106, %s107
    %p118 = scmp.eq.s32.totalorder %s15, 0
    %p119 = por %p117, %p118
    %p120 = scmp.ne.s32.totalorder %s106, %s107
    %p121 = scmp.eq.s32.totalorder %s16, 1
    %p122 = por %p120, %p121
    %p124 = scmp.ne.s32.totalorder %s107, %s123
    %p125 = scmp.eq.s32.totalorder %s16, 0
    %p126 = por %p124, %p125
    %s127 = ssub.s32 %s17, %s36
    %s128 = ssub.s32 %s18, %s32
    %s129 = sor.u32 %s127, %s128
    %s130 = ssub.s32 %s19, %s28
    %s131 = sor.u32 %s129, %s130
    %p132 = scmp.eq.s32.totalorder %s131, 0
    %s134 = sadd.s32 %s133, 1
    %s135 = scalar_select %p132, %s133, %s134
    %p138 = pneg %p132
    %p139 = scmp.eq.s32.totalorder %s10, 1
    %p140 = por %p138, %p139
    %p141 = scmp.ne.s32.totalorder %s133, %s136
    %p142 = scmp.eq.s32.totalorder %s10, 0
    %p143 = por %p141, %p142
    %p144 = scmp.ne.s32.totalorder %s133, %s136
    %p145 = scmp.eq.s32.totalorder %s15, 1
    %p146 = por %p144, %p145
    %p147 = scmp.ne.s32.totalorder %s136, %s137
    %p148 = scmp.eq.s32.totalorder %s15, 0
    %p149 = por %p147, %p148
    %p150 = scmp.ne.s32.totalorder %s136, %s137
    %p151 = scmp.eq.s32.totalorder %s16, 1
    %p152 = por %p150, %p151
    %p154 = scmp.ne.s32.totalorder %s137, %s153
    %p155 = scmp.eq.s32.totalorder %s16, 0
    %p156 = por %p154, %p155
    %s157 = ssub.s32 %s17, %s36
    %s158 = ssub.s32 %s18, %s32
    %s159 = sor.u32 %s157, %s158
    %s160 = ssub.s32 %s19, %s28
    %s161 = sor.u32 %s159, %s160
    %p162 = scmp.eq.s32.totalorder %s161, 0
    %s164 = sadd.s32 %s163, 1
    %s165 = scalar_select %p162, %s163, %s164
    %p168 = pneg %p162
    %p169 = scmp.eq.s32.totalorder %s10, 1
    %p170 = por %p168, %p169
    %p171 = scmp.ne.s32.totalorder %s163, %s166
    %p172 = scmp.eq.s32.totalorder %s10, 0
    %p173 = por %p171, %p172
    %p174 = scmp.ne.s32.totalorder %s163, %s166
    %p175 = scmp.eq.s32.totalorder %s15, 1
    %p176 = por %p174, %p175
    %p177 = scmp.ne.s32.totalorder %s166, %s167
    %p178 = scmp.eq.s32.totalorder %s15, 0
    %p179 = por %p177, %p178
    %p180 = scmp.ne.s32.totalorder %s166, %s167
    %p181 = scmp.eq.s32.totalorder %s16, 1
    %p182 = por %p180, %p181
    %p184 = scmp.ne.s32.totalorder %s167, %s183
    %p185 = scmp.eq.s32.totalorder %s16, 0
    %p186 = por %p184, %p185
    %p187 = scmp.le.s32.totalorder 1, %s10
    %p188 = scmp.lt.s32.totalorder %s10, 3
    %p189 = pnand %p187, %p188
    %p190 = pneg %p189
    // Predicated region
    $region9: #{dwt_forward.1} parent=5 // pred_check
      _
    $region10: #{dwt_forward.1} parent=5 // pred_check_branch
      %192 = sbr.rel (%p189) target = $region12
    $region11: #{dwt_forward.1} parent=5 // pred_region
      %s193 = ssub.s32 %s10, 1
    $region12: #{dwt_forward.1} parent=5 // pred_fallthru
      _
    %p194 = scmp.lt.s32.totalorder %s10, 2
    // Predicated region
    $region13: #{dwt_forward.1} parent=5 // pred_check
      %p195 = pneg %p194
    $region14: #{dwt_forward.1} parent=5 // pred_check_branch
      %197 = sbr.rel (%p195) target = $region16
    $region15: #{dwt_forward.1} parent=5 // pred_region
      // Predicated region
      $region17: #{dwt_forward.1} parent=15 // pred_check
        %p198 = pneg %p53
      $region18: #{dwt_forward.1} parent=15 // pred_check_branch
        %200 = sbr.rel (%p198) target = $region20
      $region19: #{dwt_forward.1} parent=15 // pred_region
        %s201 = smul.u32 4, %s18
        %p202 = scmp.lt.s32.totalorder %s17, 1
        %s203 = scalar_select %p202, %s17, 1
        %p204 = scmp.lt.s32.totalorder %s201, 3
        %s205 = scalar_select %p204, %s201, 3
        %p206 = scmp.lt.s32.totalorder %s19, 0
        %s207 = scalar_select %p206, %s19, 0
        %s208 = sadd.s32 %s207, %s205
        %s209 = smul.addr %s203, 4
        %s210 = sadd.s32 %s208, %s209
        %s211 = smul.addr %s210, 8
        %s212 = scalar_lea.vmem %s0, %s211
        %s213 = smul.u32 4, %s18
      $region20: #{dwt_forward.1} parent=15 // pred_fallthru
        _
      // Predicated region
      $region21: #{dwt_forward.1} parent=15 // pred_check
        %p214 = pneg %p83
      $region22: #{dwt_forward.1} parent=15 // pred_check_branch
        %216 = sbr.rel (%p214) target = $region24
      $region23: #{dwt_forward.1} parent=15 // pred_region
        %s217 = smul.u32 4, %s18
        %p218 = scmp.lt.s32.totalorder %s17, 1
        %s219 = scalar_select %p218, %s17, 1
        %p220 = scmp.lt.s32.totalorder %s217, 3
        %s221 = scalar_select %p220, %s217, 3
        %p222 = scmp.lt.s32.totalorder %s19, 0
        %s223 = scalar_select %p222, %s19, 0
        %s224 = sadd.s32 %s223, %s221
        %s225 = smul.addr %s219, 4
        %s226 = sadd.s32 %s224, %s225
        %s227 = smul.addr %s226, 8
        %s228 = scalar_lea.vmem %s1, %s227
        %s229 = smul.u32 4, %s18
      $region24: #{dwt_forward.1} parent=15 // pred_fallthru
        _
      // Predicated region
      $region25: #{dwt_forward.1} parent=15 // pred_check
        %p230 = pneg %p113
      $region26: #{dwt_forward.1} parent=15 // pred_check_branch
        %232 = sbr.rel (%p230) target = $region28
      $region27: #{dwt_forward.1} parent=15 // pred_region
        %s233 = smul.u32 4, %s18
        %p234 = scmp.lt.s32.totalorder %s17, 1
        %s235 = scalar_select %p234, %s17, 1
        %p236 = scmp.lt.s32.totalorder %s233, 3
        %s237 = scalar_select %p236, %s233, 3
        %p238 = scmp.lt.s32.totalorder %s19, 0
        %s239 = scalar_select %p238, %s19, 0
        %s240 = sadd.s32 %s239, %s237
        %s241 = smul.addr %s235, 4
        %s242 = sadd.s32 %s240, %s241
        %s243 = smul.addr %s242, 8
        %s244 = scalar_lea.vmem %s2, %s243
        %s245 = smul.u32 4, %s18
      $region28: #{dwt_forward.1} parent=15 // pred_fallthru
        _
      // Predicated region
      $region29: #{dwt_forward.1} parent=15 // pred_check
        %p246 = pneg %p143
      $region30: #{dwt_forward.1} parent=15 // pred_check_branch
        %248 = sbr.rel (%p246) target = $region32
      $region31: #{dwt_forward.1} parent=15 // pred_region
        %s249 = smul.u32 4, %s18
        %p250 = scmp.lt.s32.totalorder %s17, 1
        %s251 = scalar_select %p250, %s17, 1
        %p252 = scmp.lt.s32.totalorder %s249, 3
        %s253 = scalar_select %p252, %s249, 3
        %p254 = scmp.lt.s32.totalorder %s19, 0
        %s255 = scalar_select %p254, %s19, 0
        %s256 = sadd.s32 %s255, %s253
        %s257 = smul.addr %s251, 4
        %s258 = sadd.s32 %s256, %s257
        %s259 = smul.addr %s258, 8
        %s260 = scalar_lea.vmem %s3, %s259
        %s261 = smul.u32 4, %s18
      $region32: #{dwt_forward.1} parent=15 // pred_fallthru
        _
    $region16: #{dwt_forward.1} parent=5 // pred_fallthru
      _
    %p262 = scmp.le.s32.totalorder 1, %s10
    %p263 = scmp.lt.s32.totalorder %s10, 3
    %p264 = pnand %p262, %p263
    %p265 = pneg %p264
    // Predicated region
    $region33: #{dwt_forward.1} parent=5 // pred_check
      _
    $region34: #{dwt_forward.1} parent=5 // pred_check_branch
      %267 = sbr.rel (%p264) target = $region36
    $region35: #{dwt_forward.1} parent=5 // pred_region
      %s268 = ssub.s32 %s10, 1
      %s269 = smul.u32 4, %s21
      %p270 = scmp.lt.s32.totalorder %s20, 1
      %s271 = scalar_select %p270, %s20, 1
      %p272 = scmp.lt.s32.totalorder %s269, 3
      %s273 = scalar_select %p272, %s269, 3
      %p274 = scmp.lt.s32.totalorder %s22, 0
      %s275 = scalar_select %p274, %s22, 0
      %s276 = sadd.s32 %s275, %s273
      %s277 = smul.addr %s271, 4
      %s278 = sadd.s32 %s276, %s277
      %s279 = smul.addr %s278, 8
      %s280 = scalar_lea.vmem %s0, %s279
      %p281 = pneg %p59
      %p282 = pneg %p56
      %s283 = smul.u32 4, %s21
      %p284 = scmp.lt.s32.totalorder %s20, 1
      %s285 = scalar_select %p284, %s20, 1
      %p286 = scmp.lt.s32.totalorder %s283, 3
      %s287 = scalar_select %p286, %s283, 3
      %p288 = scmp.lt.s32.totalorder %s22, 0
      %s289 = scalar_select %p288, %s22, 0
      %s290 = sadd.s32 %s289, %s287
      %s291 = smul.addr %s285, 4
      %s292 = sadd.s32 %s290, %s291
      %s293 = smul.addr %s292, 8
      %s294 = scalar_lea.vmem %s1, %s293
      %p295 = pneg %p89
      %p296 = pneg %p86
      %s297 = smul.u32 4, %s21
      %p298 = scmp.lt.s32.totalorder %s20, 1
      %s299 = scalar_select %p298, %s20, 1
      %p300 = scmp.lt.s32.totalorder %s297, 3
      %s301 = scalar_select %p300, %s297, 3
      %p302 = scmp.lt.s32.totalorder %s22, 0
      %s303 = scalar_select %p302, %s22, 0
      %s304 = sadd.s32 %s303, %s301
      %s305 = smul.addr %s299, 4
      %s306 = sadd.s32 %s304, %s305
      %s307 = smul.addr %s306, 8
      %s308 = scalar_lea.vmem %s2, %s307
      %p309 = pneg %p119
      %p310 = pneg %p116
      %s311 = smul.u32 4, %s21
      %p312 = scmp.lt.s32.totalorder %s20, 1
      %s313 = scalar_select %p312, %s20, 1
      %p314 = scmp.lt.s32.totalorder %s311, 3
      %s315 = scalar_select %p314, %s311, 3
      %p316 = scmp.lt.s32.totalorder %s22, 0
      %s317 = scalar_select %p316, %s22, 0
      %s318 = sadd.s32 %s317, %s315
      %s319 = smul.addr %s313, 4
      %s320 = sadd.s32 %s318, %s319
      %s321 = smul.addr %s320, 8
      %s322 = scalar_lea.vmem %s3, %s321
      %p323 = pneg %p149
      %p324 = pneg %p146
      %p325 = pneg %p179
      %p326 = pneg %p176
      %s327 = smul.u32 4, %s21
      %p328 = scmp.lt.s32.totalorder %s20, 1
      %s329 = scalar_select %p328, %s20, 1
      %p330 = scmp.lt.s32.totalorder %s327, 3
      %s331 = scalar_select %p330, %s327, 3
      %p332 = scmp.lt.s32.totalorder %s22, 0
      %s333 = scalar_select %p332, %s22, 0
      %s334 = sadd.s32 %s333, %s331
      %s335 = smul.addr %s329, 16
      %s336 = sadd.s32 %s334, %s335
      %s337 = smul.addr %s336, 8
      %s338 = scalar_lea.vmem %s4, %s337
      %s339 = smul.u32 4, %s21
      %p340 = scmp.lt.s32.totalorder %s20, 1
      %s341 = scalar_select %p340, %s20, 1
      %p342 = scmp.lt.s32.totalorder %s339, 3
      %s343 = scalar_select %p342, %s339, 3
      %p344 = scmp.lt.s32.totalorder %s22, 0
      %s345 = scalar_select %p344, %s22, 0
      %s346 = sadd.s32 %s345, %s343
      %s347 = smul.addr %s341, 4
      %s348 = sadd.s32 %s346, %s347
      %s349 = smul.addr %s348, 8
      %s350 = scalar_lea.vmem %s0, %s349
      %s351 = smul.u32 4, %s21
      %s352 = smul.u32 4, %s21
      %p353 = scmp.lt.s32.totalorder %s20, 1
      %s354 = scalar_select %p353, %s20, 1
      %p355 = scmp.lt.s32.totalorder %s352, 3
      %s356 = scalar_select %p355, %s352, 3
      %p357 = scmp.lt.s32.totalorder %s22, 0
      %s358 = scalar_select %p357, %s22, 0
      %s359 = sadd.s32 %s358, %s356
      %s360 = smul.addr %s354, 4
      %s361 = sadd.s32 %s359, %s360
      %s362 = smul.addr %s361, 8
      %s363 = scalar_lea.vmem %s1, %s362
      %s364 = smul.u32 4, %s21
      %s365 = smul.u32 4, %s21
      %p366 = scmp.lt.s32.totalorder %s20, 1
      %s367 = scalar_select %p366, %s20, 1
      %p368 = scmp.lt.s32.totalorder %s365, 3
      %s369 = scalar_select %p368, %s365, 3
      %p370 = scmp.lt.s32.totalorder %s22, 0
      %s371 = scalar_select %p370, %s22, 0
      %s372 = sadd.s32 %s371, %s369
      %s373 = smul.addr %s367, 4
      %s374 = sadd.s32 %s372, %s373
      %s375 = smul.addr %s374, 8
      %s376 = scalar_lea.vmem %s2, %s375
      %s377 = smul.u32 4, %s21
      %s378 = smul.u32 4, %s21
      %p379 = scmp.lt.s32.totalorder %s20, 1
      %s380 = scalar_select %p379, %s20, 1
      %p381 = scmp.lt.s32.totalorder %s378, 3
      %s382 = scalar_select %p381, %s378, 3
      %p383 = scmp.lt.s32.totalorder %s22, 0
      %s384 = scalar_select %p383, %s22, 0
      %s385 = sadd.s32 %s384, %s382
      %s386 = smul.addr %s380, 4
      %s387 = sadd.s32 %s385, %s386
      %s388 = smul.addr %s387, 8
      %s389 = scalar_lea.vmem %s3, %s388
      %s390 = smul.u32 4, %s21
      %s391 = smul.u32 4, %s21
      %p392 = scmp.lt.s32.totalorder %s20, 1
      %s393 = scalar_select %p392, %s20, 1
      %p394 = scmp.lt.s32.totalorder %s391, 3
      %s395 = scalar_select %p394, %s391, 3
      %p396 = scmp.lt.s32.totalorder %s22, 0
      %s397 = scalar_select %p396, %s22, 0
      %s398 = sadd.s32 %s397, %s395
      %s399 = smul.addr %s393, 16
      %s400 = sadd.s32 %s398, %s399
      %s401 = smul.addr %s400, 8
      %s402 = scalar_lea.vmem %s4, %s401
      %s403 = smul.u32 4, %s21
      %v404 = vld [vmem:[%s350] sm:$0xff]
      %v405 = vld [vmem:[%s350 + $0x8] sm:$0xff]
      %v406 = vld [vmem:[%s350 + $0x10] sm:$0xff]
      %v407 = vld [vmem:[%s350 + $0x18] sm:$0xff]
      %v408 = vld [vmem:[%s363] sm:$0xff]
      %v409 = vld [vmem:[%s363 + $0x8] sm:$0xff]
      %v410 = vld [vmem:[%s363 + $0x10] sm:$0xff]
      %v411 = vld [vmem:[%s363 + $0x18] sm:$0xff]
      %v412 = vld [vmem:[%s376] sm:$0xff]
      %v413 = vld [vmem:[%s376 + $0x8] sm:$0xff]
      %v414 = vld [vmem:[%s376 + $0x10] sm:$0xff]
      %v415 = vld [vmem:[%s376 + $0x18] sm:$0xff]
      %v416 = vld [vmem:[%s389] sm:$0xff]
      %v417 = vld [vmem:[%s389 + $0x8] sm:$0xff]
      %v418 = vld [vmem:[%s389 + $0x10] sm:$0xff]
      %v419 = vld [vmem:[%s389 + $0x18] sm:$0xff]
      %v420 = vadd.f32 %v404, %v408
      %v421 = vadd.f32 %v405, %v409
      %v422 = vadd.f32 %v406, %v410
      %v423 = vadd.f32 %v407, %v411
      %v424 = vmul.f32 %v420, 0.5
      %v425 = vmul.f32 %v421, 0.5
      %v426 = vmul.f32 %v422, 0.5
      %v427 = vmul.f32 %v423, 0.5
      %v428 = vadd.f32 %v412, %v416
      %v429 = vadd.f32 %v413, %v417
      %v430 = vadd.f32 %v414, %v418
      %v431 = vadd.f32 %v415, %v419
      %v432 = vmul.f32 %v428, 0.5
      %v433 = vmul.f32 %v429, 0.5
      %v434 = vmul.f32 %v430, 0.5
      %v435 = vmul.f32 %v431, 0.5
      %v436 = vsub.f32 %v408, %v404
      %v437 = vsub.f32 %v409, %v405
      %v438 = vsub.f32 %v410, %v406
      %v439 = vsub.f32 %v411, %v407
      %v440 = vmul.f32 %v436, 0.5
      %v441 = vmul.f32 %v437, 0.5
      %v442 = vmul.f32 %v438, 0.5
      %v443 = vmul.f32 %v439, 0.5
      %v444 = vsub.f32 %v416, %v412
      %v445 = vsub.f32 %v417, %v413
      %v446 = vsub.f32 %v418, %v414
      %v447 = vsub.f32 %v419, %v415
      %v448 = vmul.f32 %v444, 0.5
      %v449 = vmul.f32 %v445, 0.5
      %v450 = vmul.f32 %v446, 0.5
      %v451 = vmul.f32 %v447, 0.5
      %v452 = vadd.f32 %v424, %v432
      %v453 = vadd.f32 %v425, %v433
      %v454 = vadd.f32 %v426, %v434
      %v455 = vadd.f32 %v427, %v435
      %vm456 = vcmask 64512
      %457 = vst.msk [vmem:[%s402] sm:$0xff] %vm456, %v452
      %458 = vst.msk [vmem:[%s402 + $0x8] sm:$0xff] %vm456, %v453
      %459 = vst.msk [vmem:[%s402 + $0x10] sm:$0xff] %vm456, %v454
      %460 = vst.msk [vmem:[%s402 + $0x18] sm:$0xff] %vm456, %v455
      %v461 = vsub.f32 %v432, %v424
      %v462 = vsub.f32 %v433, %v425
      %v463 = vsub.f32 %v434, %v426
      %v464 = vsub.f32 %v435, %v427
      %s465 = scalar_lea.vmem %s402, 32
      %466 = vst.msk [vmem:[%s465] sm:$0xff] %vm456, %v461
      %467 = vst.msk [vmem:[%s465 + $0x8] sm:$0xff] %vm456, %v462
      %468 = vst.msk [vmem:[%s465 + $0x10] sm:$0xff] %vm456, %v463
      %469 = vst.msk [vmem:[%s465 + $0x18] sm:$0xff] %vm456, %v464
      %v470 = vadd.f32 %v440, %v448
      %v471 = vadd.f32 %v441, %v449
      %v472 = vadd.f32 %v442, %v450
      %v473 = vadd.f32 %v443, %v451
      %s474 = scalar_lea.vmem %s402, 64
      %475 = vst.msk [vmem:[%s474] sm:$0xff] %vm456, %v470
      %476 = vst.msk [vmem:[%s474 + $0x8] sm:$0xff] %vm456, %v471
      %477 = vst.msk [vmem:[%s474 + $0x10] sm:$0xff] %vm456, %v472
      %478 = vst.msk [vmem:[%s474 + $0x18] sm:$0xff] %vm456, %v473
      %v479 = vsub.f32 %v448, %v440
      %v480 = vsub.f32 %v449, %v441
      %v481 = vsub.f32 %v450, %v442
      %v482 = vsub.f32 %v451, %v443
      %s483 = scalar_lea.vmem %s402, 96
      %484 = vst.msk [vmem:[%s483] sm:$0xff] %vm456, %v479
      %485 = vst.msk [vmem:[%s483 + $0x8] sm:$0xff] %vm456, %v480
      %486 = vst.msk [vmem:[%s483 + $0x10] sm:$0xff] %vm456, %v481
      %487 = vst.msk [vmem:[%s483 + $0x18] sm:$0xff] %vm456, %v482
      %s488 = smul.u32 4, %s21
      %p489 = scmp.lt.s32.totalorder %s20, 1
      %s490 = scalar_select %p489, %s20, 1
      %p491 = scmp.lt.s32.totalorder %s488, 3
      %s492 = scalar_select %p491, %s488, 3
      %p493 = scmp.lt.s32.totalorder %s22, 0
      %s494 = scalar_select %p493, %s22, 0
      %s495 = sadd.s32 %s494, %s492
      %s496 = smul.addr %s490, 16
      %s497 = sadd.s32 %s495, %s496
      %s498 = smul.addr %s497, 8
      %s499 = scalar_lea.vmem %s4, %s498
      // Predicated region
      $region37: #{dwt_forward.1} parent=35 // pred_check
        %p500 = pneg %p176
      $region38: #{dwt_forward.1} parent=35 // pred_check_branch
        %502 = sbr.rel (%p500) target = $region40
      $region39: #{dwt_forward.1} parent=35 // pred_region
        %s503 = smul.u32 4, %s21
      $region40: #{dwt_forward.1} parent=35 // pred_fallthru
        _
    $region36: #{dwt_forward.1} parent=5 // pred_fallthru
      _
    %p504 = scmp.le.s32.totalorder 2, %s10
    // Predicated region
    $region41: #{dwt_forward.1} parent=5 // pred_check
      %p505 = pneg %p504
    $region42: #{dwt_forward.1} parent=5 // pred_check_branch
      %507 = sbr.rel (%p505) target = $region44
    $region43: #{dwt_forward.1} parent=5 // pred_region
      %s508 = ssub.s32 %s10, 2
      // Predicated region
      $region45: #{dwt_forward.1} parent=43 // pred_check
        %p509 = pneg %p182
      $region46: #{dwt_forward.1} parent=43 // pred_check_branch
        %511 = sbr.rel (%p509) target = $region48
      $region47: #{dwt_forward.1} parent=43 // pred_region
        %s512 = smul.u32 4, %s24
        %p513 = scmp.lt.s32.totalorder %s23, 1
        %s514 = scalar_select %p513, %s23, 1
        %p515 = scmp.lt.s32.totalorder %s512, 3
        %s516 = scalar_select %p515, %s512, 3
        %p517 = scmp.lt.s32.totalorder %s25, 0
        %s518 = scalar_select %p517, %s25, 0
        %s519 = sadd.s32 %s518, %s516
        %s520 = smul.addr %s514, 16
        %s521 = sadd.s32 %s519, %s520
        %s522 = smul.addr %s521, 8
        %s523 = scalar_lea.vmem %s4, %s522
      $region48: #{dwt_forward.1} parent=43 // pred_fallthru
        _
    $region44: #{dwt_forward.1} parent=5 // pred_fallthru
      _
  $region6: #{dwt_forward.1} parent=0 // loop_footer
    %s14 = sadd.s32 1, %s10
  $region7: #{dwt_forward.1} parent=0 // loop_footer_branch
    %9 = sbr.rel target = $region3
  $region8: #{dwt_forward.1} parent=0 // loop_exit
    _

</llo_original>
